<compile_context>
chip_gen: v5e
topology: v5e:2x2
jax: 0.10.0
libtpu: 0.0.40
codegen_flags: <defaults>
</compile_context>

<pallas_src>
import functools

import jax
import jax.numpy as jnp
from jax.experimental import pallas as pl
from jax.experimental.pallas import tpu as pltpu

EPS = 1e-5


def _round_up(a, b):
    return ((a + b - 1) // b) * b


# --------------------------------------------------------------------------
# Kernels
# --------------------------------------------------------------------------

def _lin_stats_kernel(x_ref, w_ref, b_ref, h_ref, stats_ref):
    """h = W @ x + b (lane-major) for one lane tile; accumulate per-channel
    [sum, sum-of-squares] of h in f32 (before any store-side downcast).
    Grid is (ncores, tiles_per_core); stats block is per-core."""
    t = pl.program_id(1)                                # tile axis
    h = jnp.dot(w_ref[...], x_ref[...],
                preferred_element_type=jnp.float32) + b_ref[...]
    h_ref[...] = h.astype(h_ref.dtype)

    @pl.when(t == 0)
    def _():
        stats_ref[...] = jnp.zeros_like(stats_ref)

    stats_ref[...] += jnp.concatenate(
        [jnp.sum(h, axis=1, keepdims=True),
         jnp.sum(h * h, axis=1, keepdims=True)], axis=1)


def _lin_kernel(x_ref, w_ref, b_ref, o_ref):
    """Final (BN-folded) linear: o = W @ x + b, fully parallel over tiles."""
    o_ref[...] = (jnp.dot(w_ref[...], x_ref[...],
                          preferred_element_type=jnp.float32)
                  + b_ref[...]).astype(o_ref.dtype)


def _fused_kernel(x_ref, w1_ref, b1_ref, g1_ref, be1_ref,
                  w2_ref, b2_ref, g2_ref, be2_ref,
                  w3_ref, b3_ref, out_ref, *, n_true):
    """Whole network in one call: everything resident in VMEM (small-N path).
    Training-mode BatchNorm1d (per-batch mean, biased var, eps=1e-5) is folded
    into the following linear."""
    f32 = jnp.float32
    x = x_ref[...]                                      # (c_in, n_pad)
    n_pad = x.shape[1]
    inv_n = 1.0 / float(n_true)
    has_pad = n_pad != n_true
    if has_pad:
        lane = jax.lax.broadcasted_iota(jnp.int32, (1, n_pad), 1)
        valid = lane < n_true

    def batch_stats(h):
        hm = jnp.where(valid, h, 0.0) if has_pad else h
        m = jnp.sum(hm, axis=1, keepdims=True) * inv_n
        v = jnp.sum(hm * hm, axis=1, keepdims=True) * inv_n - m * m
        return m, v

    def fold(m, v, g, be, w_next, b_next):
        scale = g * jax.lax.rsqrt(v + EPS)              # (c, 1)
        shift = be - m * scale
        w_eff = w_next * scale.T                        # column-scaled weight
        b_eff = jnp.dot(w_next, shift, preferred_element_type=f32) + b_next
        return w_eff, b_eff

    h1 = jnp.dot(w1_ref[...], x, preferred_element_type=f32) + b1_ref[...]
    m1, v1 = batch_stats(h1)
    w2e, b2e = fold(m1, v1, g1_ref[...], be1_ref[...], w2_ref[...], b2_ref[...])

    h2 = jnp.dot(w2e, h1, preferred_element_type=f32) + b2e
    m2, v2 = batch_stats(h2)
    w3e, b3e = fold(m2, v2, g2_ref[...], be2_ref[...], w3_ref[...], b3_ref[...])

    out_ref[...] = (jnp.dot(w3e, h2, preferred_element_type=f32)
                    + b3e).astype(out_ref.dtype)


# --------------------------------------------------------------------------
# Wrappers
# --------------------------------------------------------------------------

def _fused_forward(x, p, *, vmem_limit):
    f32 = jnp.float32
    n, c_in = x.shape
    c_out = p["w1"].shape[0]
    n_pad = _round_up(n, 128)

    x_t = x.astype(f32).T                               # (c_in, n) lane-major
    if n_pad != n:
        x_t = jnp.pad(x_t, ((0, 0), (0, n_pad - n)))

    col = lambda v: v.astype(f32).reshape(-1, 1)
    args = (x_t,
            p["w1"].astype(f32), col(p["b1"]), col(p["g1"]), col(p["be1"]),
            p["w2"].astype(f32), col(p["b2"]), col(p["g2"]), col(p["be2"]),
            p["w3"].astype(f32), col(p["b3"]))

    full = lambda s: pl.BlockSpec(s, lambda i: (0, 0))
    y_t = pl.pallas_call(
        functools.partial(_fused_kernel, n_true=n),
        out_shape=jax.ShapeDtypeStruct((c_out, n_pad), f32),
        grid=(1,),
        in_specs=[full(a.shape) for a in args],
        out_specs=full((c_out, n_pad)),
        compiler_params=pltpu.CompilerParams(
            dimension_semantics=("arbitrary",),
            vmem_limit_bytes=vmem_limit),
    )(*args)
    return y_t[:, :n].T


def _tiled_forward(x, p, *, tn_max, idt):
    f32 = jnp.float32
    n, c_in = x.shape
    c_out = p["w1"].shape[0]

    n_128 = _round_up(n, 128)
    tn = min(_round_up(tn_max, 128), n_128)             # lane tile (mult of 128)
    num_tiles = (n_128 + tn - 1) // tn
    ncores = 2 if num_tiles >= 2 else 1                 # split stats per core
    num_tiles = _round_up(num_tiles, ncores)
    tpc = num_tiles // ncores                           # tiles per core
    n_pad = num_tiles * tn
    pad_cols = float(n_pad - n)

    x_t = x.astype(f32).T                               # (c_in, n) lane-major
    if n_pad != n:
        x_t = jnp.pad(x_t, ((0, 0), (0, n_pad - n)))

    col = lambda v: v.astype(f32).reshape(-1, 1)
    cp_acc = pltpu.CompilerParams(
        dimension_semantics=("parallel", "arbitrary"),
        vmem_limit_bytes=32 << 20)
    cp_par = pltpu.CompilerParams(
        dimension_semantics=("parallel",),
        vmem_limit_bytes=32 << 20)

    def lin_stats(a, w, b, out_dtype):
        c_a = a.shape[0]
        return pl.pallas_call(
            _lin_stats_kernel,
            out_shape=(jax.ShapeDtypeStruct((c_out, n_pad), out_dtype),
                       jax.ShapeDtypeStruct((ncores * c_out, 2), f32)),
            grid=(ncores, tpc),
            in_specs=[pl.BlockSpec((c_a, tn), lambda c, t: (0, c * tpc + t)),
                      pl.BlockSpec((c_out, c_a), lambda c, t: (0, 0)),
                      pl.BlockSpec((c_out, 1), lambda c, t: (0, 0))],
            out_specs=(pl.BlockSpec((c_out, tn),
                                    lambda c, t: (0, c * tpc + t)),
                       pl.BlockSpec((c_out, 2), lambda c, t: (c, 0))),
            compiler_params=cp_acc,
        )(a, w, b)

    def fold_bn(stats_all, pad_val, g, be, w_next, b_next):
        """Fold training-mode BN (batch stats) into the next linear, on tiny
        (c_out, *) data in plain JAX. Pad columns' constant contribution
        (pad_val per channel) is subtracted from the accumulated stats."""
        stats = stats_all.reshape(ncores, c_out, 2).sum(axis=0)   # (c_out, 2)
        s = stats[:, 0:1] - pad_cols * pad_val
        ss = stats[:, 1:2] - pad_cols * pad_val * pad_val
        mean = s / n
        var = ss / n - mean * mean                      # biased (training) var
        scale = col(g) * jax.lax.rsqrt(var + EPS)
        shift = col(be) - mean * scale
        w_eff = w_next.astype(f32) * scale[:, 0][None, :]
        b_eff = jnp.dot(w_next.astype(f32), shift,
                        preferred_element_type=f32) + col(b_next)
        return w_eff, b_eff

    # pass 1: linear1 + batch stats of h1 (pad columns of h1 hold exactly b1)
    b1 = col(p["b1"])
    h1, stats1 = lin_stats(x_t, p["w1"].astype(f32), b1, idt)

    # fold BN1 into linear2 (grid-invariant, done once in the wrapper)
    w2e, b2e = fold_bn(stats1, b1, p["g1"], p["be1"], p["w2"], p["b2"])

    # pass 2: (BN1-folded) linear2 + batch stats of h2
    h2, stats2 = lin_stats(h1, w2e.astype(idt), b2e, idt)

    # pad columns of h2 hold this constant (mirrors the kernel's math/dtypes)
    pad_h2 = jnp.dot(w2e.astype(idt), b1.astype(idt),
                     preferred_element_type=f32) + b2e
    w3e, b3e = fold_bn(stats2, pad_h2, p["g2"], p["be2"], p["w3"], p["b3"])

    # pass 3: (BN2-folded) linear3, fully parallel over lane tiles
    y_t = pl.pallas_call(
        _lin_kernel,
        out_shape=jax.ShapeDtypeStruct((c_out, n_pad), f32),
        grid=(num_tiles,),
        in_specs=[pl.BlockSpec((c_out, tn), lambda t: (0, t)),
                  pl.BlockSpec((c_out, c_out), lambda t: (0, 0)),
                  pl.BlockSpec((c_out, 1), lambda t: (0, 0))],
        out_specs=pl.BlockSpec((c_out, tn), lambda t: (0, t)),
        compiler_params=cp_par,
    )(h2, w3e.astype(idt), b3e)

    return y_t[:, :n].T


def edge_feature_net(x, params, *, tn_max=4096,
                     intermediate_dtype=jnp.float32, force_tiled=False):
    """x: (N, num_input) float32. Returns (N, num_output) float32, matching
    EdgeFeatureNet's training-mode forward (per-batch BN statistics)."""
    n, c_in = x.shape
    c_out = params["w1"].shape[0]
    n_128 = _round_up(n, 128)

    try:
        vmem_cap = int(pltpu.get_tpu_info().vmem_capacity_bytes)
    except Exception:
        vmem_cap = 64 << 20                             # conservative (v7x TC)

    # Small-N fast path: x, h1, h2, out + compiler temps all resident in VMEM.
    fused_bytes = 4 * n_128 * (2 * c_in + 8 * c_out)    # generous estimate
    fused_budget = min(vmem_cap // 2, 64 << 20)
    if (not force_tiled) and fused_bytes <= fused_budget:
        vmem_limit = int(min(vmem_cap * 3 // 4, 96 << 20))
        return _fused_forward(x, params, vmem_limit=vmem_limit)

    return _tiled_forward(x, params, tn_max=tn_max, idt=intermediate_dtype)


# --------------------------------------------------------------------------
# Parameters / reference
# --------------------------------------------------------------------------

def init_params(key, num_input, num_output):
    """Deterministic synthetic parameters matching EdgeFeatureNet.__init__.
    Linear weights are stored in PyTorch (out, in) layout."""
    ks = jax.random.split(key, 8)

    def linear_init(kw, kb, fan_in, fan_out):
        bound = 1.0 / jnp.sqrt(jnp.float32(fan_in))
        w = jax.random.uniform(kw, (fan_out, fan_in), jnp.float32, -bound, bound)
        b = jax.random.uniform(kb, (fan_out,), jnp.float32, -bound, bound)
        return w, b

    w1, b1 = linear_init(ks[0], ks[1], num_input, num_output)
    w2, b2 = linear_init(ks[2], ks[3], num_output, num_output)
    w3, b3 = linear_init(ks[4], ks[5], num_output, num_output)
    # BatchNorm affine params (perturb layer 1 so the scale/shift path is real)
    g1 = 1.0 + 0.1 * jax.random.normal(ks[6], (num_output,), jnp.float32)
    be1 = 0.1 * jax.random.normal(ks[7], (num_output,), jnp.float32)
    g2 = jnp.ones((num_output,), jnp.float32)
    be2 = jnp.zeros((num_output,), jnp.float32)
    return dict(w1=w1, b1=b1, g1=g1, be1=be1,
                w2=w2, b2=b2, g2=g2, be2=be2,
                w3=w3, b3=b3)


def _reference(x, p):
    """Pure-JAX reference with PyTorch training-mode BatchNorm semantics."""
    eps = 1e-5
    h = x @ p["w1"].T + p["b1"]
    h = (h - h.mean(0)) / jnp.sqrt(h.var(0) + eps) * p["g1"] + p["be1"]
    h = h @ p["w2"].T + p["b2"]
    h = (h - h.mean(0)) / jnp.sqrt(h.var(0) + eps) * p["g2"] + p["be2"]
    return h @ p["w3"].T + p["b3"]


if __name__ == "__main__":
    num_input = 16
    num_output = 16

    key = jax.random.PRNGKey(0)
    k_x1, k_x2, k_p = jax.random.split(key, 3)
    params = init_params(k_p, num_input, num_output)

    # 1) small-N fused path (single pallas_call, all-resident), padding exercised
    n1 = 1000
    x1 = jax.random.normal(k_x1, (n1, num_input), jnp.float32)
    out1 = jax.block_until_ready(edge_feature_net(x1, params))
    ref1 = _reference(x1, params)
    assert out1.shape == (n1, num_output)
    err1 = float(jnp.max(jnp.abs(out1 - ref1)))
    assert jnp.allclose(out1, ref1, atol=1e-4, rtol=1e-4), err1

    # 2) tiled path (forced), f32 intermediates: multi-tile grid, 2-core stats
    #    split, analytic pad-column stat correction
    n2 = 9000
    x2 = jax.random.normal(k_x2, (n2, num_input), jnp.float32)
    ref2 = _reference(x2, params)
    out2 = jax.block_until_ready(
        edge_feature_net(x2, params, force_tiled=True, tn_max=2048))
    assert out2.shape == (n2, num_output)
    err2 = float(jnp.max(jnp.abs(out2 - ref2)))
    assert jnp.allclose(out2, ref2, atol=1e-4, rtol=1e-4), err2

    # 3) tiled path with bf16 intermediates (memory-bound option); loose check
    out3 = jax.block_until_ready(
        edge_feature_net(x2, params, force_tiled=True, tn_max=2048,
                         intermediate_dtype=jnp.bfloat16))
    err3 = float(jnp.max(jnp.abs(out3 - ref2)))
    assert err3 < 0.1, err3

    print("KERNEL_OK")
</pallas_src>

<mosaic_0001>
module attributes {stable_mosaic.version = 11 : i64} {
  func.func @_fused_kernel(%arg0: i32, %arg1: memref<16x1024xf32, #tpu.memory_space<vmem>>, %arg2: memref<16x16xf32, #tpu.memory_space<vmem>>, %arg3: memref<16x1xf32, #tpu.memory_space<vmem>>, %arg4: memref<16x1xf32, #tpu.memory_space<vmem>>, %arg5: memref<16x1xf32, #tpu.memory_space<vmem>>, %arg6: memref<16x16xf32, #tpu.memory_space<vmem>>, %arg7: memref<16x1xf32, #tpu.memory_space<vmem>>, %arg8: memref<16x1xf32, #tpu.memory_space<vmem>>, %arg9: memref<16x1xf32, #tpu.memory_space<vmem>>, %arg10: memref<16x16xf32, #tpu.memory_space<vmem>>, %arg11: memref<16x1xf32, #tpu.memory_space<vmem>>, %arg12: memref<16x1024xf32, #tpu.memory_space<vmem>>) attributes {dimension_semantics = [#tpu.dimension_semantics<arbitrary>], iteration_bounds = array<i64: 1>, scalar_prefetch = 0 : i64, scratch_operands = 0 : i64, tpu.core_type = #tpu.core_type<tc>, window_params = [{pipeline_mode = #tpu.pipeline_mode<synchronous>, transform_indices = @transform_0, window_bounds = array<i64: 16, 1024>}, {pipeline_mode = #tpu.pipeline_mode<synchronous>, transform_indices = @transform_1, window_bounds = array<i64: 16, 16>}, {pipeline_mode = #tpu.pipeline_mode<synchronous>, transform_indices = @transform_2, window_bounds = array<i64: 16, 1>}, {pipeline_mode = #tpu.pipeline_mode<synchronous>, transform_indices = @transform_3, window_bounds = array<i64: 16, 1>}, {pipeline_mode = #tpu.pipeline_mode<synchronous>, transform_indices = @transform_4, window_bounds = array<i64: 16, 1>}, {pipeline_mode = #tpu.pipeline_mode<synchronous>, transform_indices = @transform_5, window_bounds = array<i64: 16, 16>}, {pipeline_mode = #tpu.pipeline_mode<synchronous>, transform_indices = @transform_6, window_bounds = array<i64: 16, 1>}, {pipeline_mode = #tpu.pipeline_mode<synchronous>, transform_indices = @transform_7, window_bounds = array<i64: 16, 1>}, {pipeline_mode = #tpu.pipeline_mode<synchronous>, transform_indices = @transform_8, window_bounds = array<i64: 16, 1>}, {pipeline_mode = #tpu.pipeline_mode<synchronous>, transform_indices = @transform_9, window_bounds = array<i64: 16, 16>}, {pipeline_mode = #tpu.pipeline_mode<synchronous>, transform_indices = @transform_10, window_bounds = array<i64: 16, 1>}, {pipeline_mode = #tpu.pipeline_mode<synchronous>, transform_indices = @transform_11, window_bounds = array<i64: 16, 1024>}]} {
    %c0 = arith.constant 0 : index
    %c0_0 = arith.constant 0 : index
    %0 = vector.load %arg1[%c0, %c0_0] : memref<16x1024xf32, #tpu.memory_space<vmem>>, vector<16x1024xf32>
    %1 = tpu.iota {dimensions = array<i32: 1>} : vector<1x1024xi32>
    %c1000_i32 = arith.constant 1000 : i32
    %2 = vector.broadcast %c1000_i32 : i32 to vector<1x1024xi32>
    %3 = arith.cmpi slt, %1, %2 : vector<1x1024xi32>
    %c0_1 = arith.constant 0 : index
    %c0_2 = arith.constant 0 : index
    %4 = vector.load %arg2[%c0_1, %c0_2] : memref<16x16xf32, #tpu.memory_space<vmem>>, vector<16x16xf32>
    %cst = arith.constant dense<0.000000e+00> : vector<16x1024xf32>
    %5 = tpu.matmul %4, %0, %cst {dimension_numbers = #tpu.dot_dimension_numbers<[1], [0], [0], [1], [0, 0, 1, 1], [], []>} : vector<16x16xf32>, vector<16x1024xf32>, vector<16x1024xf32> -> vector<16x1024xf32>
    %c0_3 = arith.constant 0 : index
    %c0_4 = arith.constant 0 : index
    %6 = vector.load %arg3[%c0_3, %c0_4] : memref<16x1xf32, #tpu.memory_space<vmem>>, vector<16x1xf32>
    %7 = vector.broadcast %6 : vector<16x1xf32> to vector<16x1024xf32>
    %8 = arith.addf %5, %7 : vector<16x1024xf32>
    %cst_5 = arith.constant 0.000000e+00 : f32
    %9 = vector.shape_cast %3 : vector<1x1024xi1> to vector<1x1024xi1>
    %10 = vector.broadcast %9 : vector<1x1024xi1> to vector<16x1024xi1>
    %11 = vector.broadcast %cst_5 : f32 to vector<16x1024xf32>
    %12 = arith.select %10, %8, %11 : vector<16x1024xi1>, vector<16x1024xf32>
    %cst_6 = arith.constant dense<0.000000e+00> : vector<16xf32>
    %13 = vector.multi_reduction <add>, %12, %cst_6 [1] : vector<16x1024xf32> to vector<16xf32>
    %14 = vector.shape_cast %13 : vector<16xf32> to vector<16x1xf32>
    %cst_7 = arith.constant 1.000000e-03 : f32
    %15 = vector.broadcast %cst_7 : f32 to vector<16x1xf32>
    %16 = arith.mulf %14, %15 : vector<16x1xf32>
    %17 = arith.mulf %12, %12 : vector<16x1024xf32>
    %cst_8 = arith.constant dense<0.000000e+00> : vector<16xf32>
    %18 = vector.multi_reduction <add>, %17, %cst_8 [1] : vector<16x1024xf32> to vector<16xf32>
    %19 = vector.shape_cast %18 : vector<16xf32> to vector<16x1xf32>
    %cst_9 = arith.constant 1.000000e-03 : f32
    %20 = vector.broadcast %cst_9 : f32 to vector<16x1xf32>
    %21 = arith.mulf %19, %20 : vector<16x1xf32>
    %22 = arith.mulf %16, %16 : vector<16x1xf32>
    %23 = arith.subf %21, %22 : vector<16x1xf32>
    %c0_10 = arith.constant 0 : index
    %c0_11 = arith.constant 0 : index
    %24 = vector.load %arg4[%c0_10, %c0_11] : memref<16x1xf32, #tpu.memory_space<vmem>>, vector<16x1xf32>
    %c0_12 = arith.constant 0 : index
    %c0_13 = arith.constant 0 : index
    %25 = vector.load %arg5[%c0_12, %c0_13] : memref<16x1xf32, #tpu.memory_space<vmem>>, vector<16x1xf32>
    %c0_14 = arith.constant 0 : index
    %c0_15 = arith.constant 0 : index
    %26 = vector.load %arg6[%c0_14, %c0_15] : memref<16x16xf32, #tpu.memory_space<vmem>>, vector<16x16xf32>
    %c0_16 = arith.constant 0 : index
    %c0_17 = arith.constant 0 : index
    %27 = vector.load %arg7[%c0_16, %c0_17] : memref<16x1xf32, #tpu.memory_space<vmem>>, vector<16x1xf32>
    %cst_18 = arith.constant 9.99999974E-6 : f32
    %28 = vector.broadcast %cst_18 : f32 to vector<16x1xf32>
    %29 = arith.addf %23, %28 : vector<16x1xf32>
    %30 = math.rsqrt %29 : vector<16x1xf32>
    %31 = arith.mulf %24, %30 : vector<16x1xf32>
    %32 = arith.mulf %16, %31 : vector<16x1xf32>
    %33 = arith.subf %25, %32 : vector<16x1xf32>
    %34 = tpu.transpose %31, [1, 0] : vector<16x1xf32> -> vector<1x16xf32>
    %35 = vector.broadcast %34 : vector<1x16xf32> to vector<16x16xf32>
    %36 = arith.mulf %26, %35 : vector<16x16xf32>
    %cst_19 = arith.constant dense<0.000000e+00> : vector<16x1xf32>
    %37 = tpu.matmul %26, %33, %cst_19 {dimension_numbers = #tpu.dot_dimension_numbers<[1], [0], [0], [1], [0, 0, 1, 1], [], []>} : vector<16x16xf32>, vector<16x1xf32>, vector<16x1xf32> -> vector<16x1xf32>
    %38 = arith.addf %37, %27 : vector<16x1xf32>
    %cst_20 = arith.constant dense<0.000000e+00> : vector<16x1024xf32>
    %39 = tpu.matmul %36, %8, %cst_20 {dimension_numbers = #tpu.dot_dimension_numbers<[1], [0], [0], [1], [0, 0, 1, 1], [], []>} : vector<16x16xf32>, vector<16x1024xf32>, vector<16x1024xf32> -> vector<16x1024xf32>
    %40 = vector.broadcast %38 : vector<16x1xf32> to vector<16x1024xf32>
    %41 = arith.addf %39, %40 : vector<16x1024xf32>
    %cst_21 = arith.constant 0.000000e+00 : f32
    %42 = vector.shape_cast %3 : vector<1x1024xi1> to vector<1x1024xi1>
    %43 = vector.broadcast %42 : vector<1x1024xi1> to vector<16x1024xi1>
    %44 = vector.broadcast %cst_21 : f32 to vector<16x1024xf32>
    %45 = arith.select %43, %41, %44 : vector<16x1024xi1>, vector<16x1024xf32>
    %cst_22 = arith.constant dense<0.000000e+00> : vector<16xf32>
    %46 = vector.multi_reduction <add>, %45, %cst_22 [1] : vector<16x1024xf32> to vector<16xf32>
    %47 = vector.shape_cast %46 : vector<16xf32> to vector<16x1xf32>
    %cst_23 = arith.constant 1.000000e-03 : f32
    %48 = vector.broadcast %cst_23 : f32 to vector<16x1xf32>
    %49 = arith.mulf %47, %48 : vector<16x1xf32>
    %50 = arith.mulf %45, %45 : vector<16x1024xf32>
    %cst_24 = arith.constant dense<0.000000e+00> : vector<16xf32>
    %51 = vector.multi_reduction <add>, %50, %cst_24 [1] : vector<16x1024xf32> to vector<16xf32>
    %52 = vector.shape_cast %51 : vector<16xf32> to vector<16x1xf32>
    %cst_25 = arith.constant 1.000000e-03 : f32
    %53 = vector.broadcast %cst_25 : f32 to vector<16x1xf32>
    %54 = arith.mulf %52, %53 : vector<16x1xf32>
    %55 = arith.mulf %49, %49 : vector<16x1xf32>
    %56 = arith.subf %54, %55 : vector<16x1xf32>
    %c0_26 = arith.constant 0 : index
    %c0_27 = arith.constant 0 : index
    %57 = vector.load %arg8[%c0_26, %c0_27] : memref<16x1xf32, #tpu.memory_space<vmem>>, vector<16x1xf32>
    %c0_28 = arith.constant 0 : index
    %c0_29 = arith.constant 0 : index
    %58 = vector.load %arg9[%c0_28, %c0_29] : memref<16x1xf32, #tpu.memory_space<vmem>>, vector<16x1xf32>
    %c0_30 = arith.constant 0 : index
    %c0_31 = arith.constant 0 : index
    %59 = vector.load %arg10[%c0_30, %c0_31] : memref<16x16xf32, #tpu.memory_space<vmem>>, vector<16x16xf32>
    %c0_32 = arith.constant 0 : index
    %c0_33 = arith.constant 0 : index
    %60 = vector.load %arg11[%c0_32, %c0_33] : memref<16x1xf32, #tpu.memory_space<vmem>>, vector<16x1xf32>
    %cst_34 = arith.constant 9.99999974E-6 : f32
    %61 = vector.broadcast %cst_34 : f32 to vector<16x1xf32>
    %62 = arith.addf %56, %61 : vector<16x1xf32>
    %63 = math.rsqrt %62 : vector<16x1xf32>
    %64 = arith.mulf %57, %63 : vector<16x1xf32>
    %65 = arith.mulf %49, %64 : vector<16x1xf32>
    %66 = arith.subf %58, %65 : vector<16x1xf32>
    %67 = tpu.transpose %64, [1, 0] : vector<16x1xf32> -> vector<1x16xf32>
    %68 = vector.broadcast %67 : vector<1x16xf32> to vector<16x16xf32>
    %69 = arith.mulf %59, %68 : vector<16x16xf32>
    %cst_35 = arith.constant dense<0.000000e+00> : vector<16x1xf32>
    %70 = tpu.matmul %59, %66, %cst_35 {dimension_numbers = #tpu.dot_dimension_numbers<[1], [0], [0], [1], [0, 0, 1, 1], [], []>} : vector<16x16xf32>, vector<16x1xf32>, vector<16x1xf32> -> vector<16x1xf32>
    %71 = arith.addf %70, %60 : vector<16x1xf32>
    %cst_36 = arith.constant dense<0.000000e+00> : vector<16x1024xf32>
    %72 = tpu.matmul %69, %41, %cst_36 {dimension_numbers = #tpu.dot_dimension_numbers<[1], [0], [0], [1], [0, 0, 1, 1], [], []>} : vector<16x16xf32>, vector<16x1024xf32>, vector<16x1024xf32> -> vector<16x1024xf32>
    %73 = vector.broadcast %71 : vector<16x1xf32> to vector<16x1024xf32>
    %74 = arith.addf %72, %73 : vector<16x1024xf32>
    %c0_37 = arith.constant 0 : index
    %c0_38 = arith.constant 0 : index
    %75 = vector.load %arg12[%c0_37, %c0_38] : memref<16x1024xf32, #tpu.memory_space<vmem>>, vector<16x1024xf32>
    tpu.vector_store %arg12[%c0_37, %c0_38], %74 {strides = array<i32>} : memref<16x1024xf32, #tpu.memory_space<vmem>>, vector<16x1024xf32>,
    return
  }
  func.func @transform_0(%arg0: i32) -> (i32, i32) {
    %c0_i32 = arith.constant 0 : i32
    %c0_i32_0 = arith.constant 0 : i32
    %c0_i32_1 = arith.constant 0 : i32
    return %c0_i32, %c0_i32_0 : i32, i32
  }
  func.func @transform_1(%arg0: i32) -> (i32, i32) {
    %c0_i32 = arith.constant 0 : i32
    %c0_i32_0 = arith.constant 0 : i32
    %c0_i32_1 = arith.constant 0 : i32
    return %c0_i32, %c0_i32_0 : i32, i32
  }
  func.func @transform_2(%arg0: i32) -> (i32, i32) {
    %c0_i32 = arith.constant 0 : i32
    %c0_i32_0 = arith.constant 0 : i32
    %c0_i32_1 = arith.constant 0 : i32
    return %c0_i32, %c0_i32_0 : i32, i32
  }
  func.func @transform_3(%arg0: i32) -> (i32, i32) {
    %c0_i32 = arith.constant 0 : i32
    %c0_i32_0 = arith.constant 0 : i32
    %c0_i32_1 = arith.constant 0 : i32
    return %c0_i32, %c0_i32_0 : i32, i32
  }
  func.func @transform_4(%arg0: i32) -> (i32, i32) {
    %c0_i32 = arith.constant 0 : i32
    %c0_i32_0 = arith.constant 0 : i32
    %c0_i32_1 = arith.constant 0 : i32
    return %c0_i32, %c0_i32_0 : i32, i32
  }
  func.func @transform_5(%arg0: i32) -> (i32, i32) {
    %c0_i32 = arith.constant 0 : i32
    %c0_i32_0 = arith.constant 0 : i32
    %c0_i32_1 = arith.constant 0 : i32
    return %c0_i32, %c0_i32_0 : i32, i32
  }
  func.func @transform_6(%arg0: i32) -> (i32, i32) {
    %c0_i32 = arith.constant 0 : i32
    %c0_i32_0 = arith.constant 0 : i32
    %c0_i32_1 = arith.constant 0 : i32
    return %c0_i32, %c0_i32_0 : i32, i32
  }
  func.func @transform_7(%arg0: i32) -> (i32, i32) {
    %c0_i32 = arith.constant 0 : i32
    %c0_i32_0 = arith.constant 0 : i32
    %c0_i32_1 = arith.constant 0 : i32
    return %c0_i32, %c0_i32_0 : i32, i32
  }
  func.func @transform_8(%arg0: i32) -> (i32, i32) {
    %c0_i32 = arith.constant 0 : i32
    %c0_i32_0 = arith.constant 0 : i32
    %c0_i32_1 = arith.constant 0 : i32
    return %c0_i32, %c0_i32_0 : i32, i32
  }
  func.func @transform_9(%arg0: i32) -> (i32, i32) {
    %c0_i32 = arith.constant 0 : i32
    %c0_i32_0 = arith.constant 0 : i32
    %c0_i32_1 = arith.constant 0 : i32
    return %c0_i32, %c0_i32_0 : i32, i32
  }
  func.func @transform_10(%arg0: i32) -> (i32, i32) {
    %c0_i32 = arith.constant 0 : i32
    %c0_i32_0 = arith.constant 0 : i32
    %c0_i32_1 = arith.constant 0 : i32
    return %c0_i32, %c0_i32_0 : i32, i32
  }
  func.func @transform_11(%arg0: i32) -> (i32, i32) {
    %c0_i32 = arith.constant 0 : i32
    %c0_i32_0 = arith.constant 0 : i32
    %c0_i32_1 = arith.constant 0 : i32
    return %c0_i32, %c0_i32_0 : i32, i32
  }
}

</mosaic_0001>

<llo_original>
// kernel: tpu_custom_call.1
$region0: #{tpu_custom_call.1}
  #allocation0 [shape = 'u32[]', space=smem, size = 0x4, offset = 0x4, fixed_abs, tag = 'smem constant byte address 0x4 - core index']
  #allocation1 [shape = 'u32[72,128]{1,0:T(1,128)}', space=vmem, size = 0x9000, scoped, tag = 'internal scratch']
  %s0 = inlined_call_operand.hbm [shape: f32[16,1024], index: 0, kind: input, shape index: {}]
  %s1 = inlined_call_operand.vmem [shape: f32[16,16], index: 1, kind: input, shape index: {}]
  %s2 = inlined_call_operand.vmem [shape: f32[16,1], index: 2, kind: input, shape index: {}]
  %s3 = inlined_call_operand.vmem [shape: f32[16,1], index: 3, kind: input, shape index: {}]
  %s4 = inlined_call_operand.vmem [shape: f32[16,1], index: 4, kind: input, shape index: {}]
  %s5 = inlined_call_operand.vmem [shape: f32[16,16], index: 5, kind: input, shape index: {}]
  %s6 = inlined_call_operand.vmem [shape: f32[16,1], index: 6, kind: input, shape index: {}]
  %s7 = inlined_call_operand.vmem [shape: f32[16,1], index: 7, kind: input, shape index: {}]
  %s8 = inlined_call_operand.vmem [shape: f32[16,1], index: 8, kind: input, shape index: {}]
  %s9 = inlined_call_operand.vmem [shape: f32[16,16], index: 9, kind: input, shape index: {}]
  %s10 = inlined_call_operand.vmem [shape: f32[16,1], index: 10, kind: input, shape index: {}]
  %s11 = inlined_call_operand.hbm [shape: f32[16,1024], index: 11, kind: output, shape index: {}]
  %s12 = sld [smem:[#allocation0]]
  $region58: #{tpu_custom_call.1} parent=0
    _
  %s14 = ssub.s32 1, %s12
  %s15 = scalar_select 0, %s14, %s12
  $region1: #{tpu_custom_call.1} parent=0
    #allocation2 [shape = 'u8[65536]{0}', space=vmem, size = 0x10000, scoped, tag = 'input window, operand 0, single buffered']
    #allocation3 [shape = 's32[1]{0}', space=sflag, size = 0x4, scoped, tag = 'scoped memory for tpu_custom_call.1']
    #allocation4 [shape = 's32[1]{0}', space=sflag, size = 0x4, scoped, tag = 'scoped memory for tpu_custom_call.1']
    #allocation5 [shape = 'u8[65536]{0}', space=vmem, size = 0x10000, scoped, tag = 'output window, operand 0, single buffered']
    %16 = vsyncpa [#allocation3], 0
    %17 = vsyncpa [#allocation4], 0
    // Predicated region
    $region2: #{tpu_custom_call.1} parent=1 // pred_check
      _
    $region3: #{tpu_custom_call.1} parent=1 // pred_check_branch
      %19 = sbr.rel (0) target = $region5
    $region4: #{tpu_custom_call.1} parent=1 // pred_region
      %21 = vsyncadd [#allocation3], 0
      %s22 = sshll.u32 %s0, 4
      %s23 = int_to_ptr.hbm [resolvable:$true] %s22
      %s24 = sshll.u32 [#allocation2], 4
      %s25 = int_to_ptr.vmem [resolvable:$true] %s24
      %30 = dma.hbm_to_vmem [thread:$0]  %s23, 2048, %s25, [#allocation3], 1024, 1024, 64
    $region5: #{tpu_custom_call.1} parent=1 // pred_fallthru
      _
    // Predicated region
    $region6: #{tpu_custom_call.1} parent=1 // pred_check
      _
    $region7: #{tpu_custom_call.1} parent=1 // pred_check_branch
      %32 = sbr.rel (0) target = $region9
    $region8: #{tpu_custom_call.1} parent=1 // pred_region
      _
    $region9: #{tpu_custom_call.1} parent=1 // pred_fallthru
      _
    // Predicated region
    $region10: #{tpu_custom_call.1} parent=1 // pred_check
      _
    $region11: #{tpu_custom_call.1} parent=1 // pred_check_branch
      %34 = sbr.rel (0) target = $region13
    $region12: #{tpu_custom_call.1} parent=1 // pred_region
      _
    $region13: #{tpu_custom_call.1} parent=1 // pred_fallthru
      _
    // Predicated region
    $region14: #{tpu_custom_call.1} parent=1 // pred_check
      _
    $region15: #{tpu_custom_call.1} parent=1 // pred_check_branch
      %36 = sbr.rel (0) target = $region17
    $region16: #{tpu_custom_call.1} parent=1 // pred_region
      _
    $region17: #{tpu_custom_call.1} parent=1 // pred_fallthru
      _
    // Predicated region
    $region18: #{tpu_custom_call.1} parent=1 // pred_check
      _
    $region19: #{tpu_custom_call.1} parent=1 // pred_check_branch
      %38 = sbr.rel (0) target = $region21
    $region20: #{tpu_custom_call.1} parent=1 // pred_region
      _
    $region21: #{tpu_custom_call.1} parent=1 // pred_fallthru
      _
    // Predicated region
    $region22: #{tpu_custom_call.1} parent=1 // pred_check
      _
    $region23: #{tpu_custom_call.1} parent=1 // pred_check_branch
      %40 = sbr.rel (0) target = $region25
    $region24: #{tpu_custom_call.1} parent=1 // pred_region
      _
    $region25: #{tpu_custom_call.1} parent=1 // pred_fallthru
      _
    // Predicated region
    $region26: #{tpu_custom_call.1} parent=1 // pred_check
      _
    $region27: #{tpu_custom_call.1} parent=1 // pred_check_branch
      %42 = sbr.rel (0) target = $region29
    $region28: #{tpu_custom_call.1} parent=1 // pred_region
      _
    $region29: #{tpu_custom_call.1} parent=1 // pred_fallthru
      _
    // Predicated region
    $region30: #{tpu_custom_call.1} parent=1 // pred_check
      _
    $region31: #{tpu_custom_call.1} parent=1 // pred_check_branch
      %44 = sbr.rel (0) target = $region33
    $region32: #{tpu_custom_call.1} parent=1 // pred_region
      _
    $region33: #{tpu_custom_call.1} parent=1 // pred_fallthru
      _
    // Predicated region
    $region34: #{tpu_custom_call.1} parent=1 // pred_check
      _
    $region35: #{tpu_custom_call.1} parent=1 // pred_check_branch
      %46 = sbr.rel (0) target = $region37
    $region36: #{tpu_custom_call.1} parent=1 // pred_region
      _
    $region37: #{tpu_custom_call.1} parent=1 // pred_fallthru
      _
    // Predicated region
    $region38: #{tpu_custom_call.1} parent=1 // pred_check
      _
    $region39: #{tpu_custom_call.1} parent=1 // pred_check_branch
      %48 = sbr.rel (0) target = $region41
    $region40: #{tpu_custom_call.1} parent=1 // pred_region
      _
    $region41: #{tpu_custom_call.1} parent=1 // pred_fallthru
      _
    // Predicated region
    $region42: #{tpu_custom_call.1} parent=1 // pred_check
      _
    $region43: #{tpu_custom_call.1} parent=1 // pred_check_branch
      %50 = sbr.rel (0) target = $region45
    $region44: #{tpu_custom_call.1} parent=1 // pred_region
      _
    $region45: #{tpu_custom_call.1} parent=1 // pred_fallthru
      _
    // Predicated region
    $region46: #{tpu_custom_call.1} parent=1 // pred_check
      _
    $region47: #{tpu_custom_call.1} parent=1 // pred_check_branch
      %52 = sbr.rel (0) target = $region49
    $region48: #{tpu_custom_call.1} parent=1 // pred_region
      %54 = dma.done [#allocation3], 2048
    $region49: #{tpu_custom_call.1} parent=1 // pred_fallthru
      _
    %v55 = vld [vmem:[#allocation2] sm:$0xff]
    %v56 = vld [vmem:[#allocation2 + $0x8] sm:$0xff]
    %v57 = vld [vmem:[#allocation2 + $0x10] sm:$0xff]
    %v58 = vld [vmem:[#allocation2 + $0x18] sm:$0xff]
    %v59 = vld [vmem:[#allocation2 + $0x20] sm:$0xff]
    %v60 = vld [vmem:[#allocation2 + $0x28] sm:$0xff]
    %v61 = vld [vmem:[#allocation2 + $0x30] sm:$0xff]
    %v62 = vld [vmem:[#allocation2 + $0x38] sm:$0xff]
    %v63 = vld [vmem:[#allocation2 + $0x40] sm:$0xff]
    %v64 = vld [vmem:[#allocation2 + $0x48] sm:$0xff]
    %v65 = vld [vmem:[#allocation2 + $0x50] sm:$0xff]
    %v66 = vld [vmem:[#allocation2 + $0x58] sm:$0xff]
    %v67 = vld [vmem:[#allocation2 + $0x60] sm:$0xff]
    %v68 = vld [vmem:[#allocation2 + $0x68] sm:$0xff]
    %v69 = vld [vmem:[#allocation2 + $0x70] sm:$0xff]
    %v70 = vld [vmem:[#allocation2 + $0x78] sm:$0xff]
    %v71 = vlaneseq
    %v72 = vand.u32 %v71, 127
    %v73 = vadd.s32 %v72, 128
    %v74 = vadd.s32 %v72, 256
    %v75 = vadd.s32 %v72, 384
    %v76 = vadd.s32 %v72, 512
    %v77 = vadd.s32 %v72, 640
    %v78 = vadd.s32 %v72, 768
    %v79 = vadd.s32 %v72, 896
    %vm80 = vcmp.lt.s32.totalorder %v72, 1000
    %vm81 = vcmp.lt.s32.totalorder %v73, 1000
    %vm82 = vcmp.lt.s32.totalorder %v74, 1000
    %vm83 = vcmp.lt.s32.totalorder %v75, 1000
    %vm84 = vcmp.lt.s32.totalorder %v76, 1000
    %vm85 = vcmp.lt.s32.totalorder %v77, 1000
    %vm86 = vcmp.lt.s32.totalorder %v78, 1000
    %vm87 = vcmp.lt.s32.totalorder %v79, 1000
    %v88 = vld [vmem:[%s1] sm:$0xff]
    %v89 = vld [vmem:[%s1 + $0x8] sm:$0xff]
    %v90 = vld [vmem:[%s2] sm:$0xff]
    %v91 = vld [vmem:[%s2 + $0x8] sm:$0xff]
    %93 = vset.pattern.permute.xlu0 0
    %94 = vperm.xlu0 %93, %v90
    %v95 = vpop.permute.xlu0 %94
    %98 = vset.pattern.permute.xlu0 0
    %99 = vperm.xlu0 %98, %v91
    %v100 = vpop.permute.xlu0 %99
    %vm102 = vcmask 130048
    %v104 = vsel %vm102, %v88, 0
    %v107 = vsel %vm102, %v89, 0
    %109 = vmatpush.msra.mxu0 0.0
    %110 = vmatpush.msra.mxu0 0.0
    %111 = vmatpush.msra.mxu0 0.0
    %112 = vmatpush.msra.mxu0 0.0
    %113 = vmatpush.msra.mxu0 0.0
    %114 = vmatpush.msra.mxu0 0.0
    %115 = vmatpush.msra.mxu0 0.0
    %116 = vmatpush.msra.mxu0 0.0
    %117 = vmatpush.msra.mxu0 0.0
    %118 = vmatpush.msra.mxu0 0.0
    %119 = vmatpush.msra.mxu0 0.0
    %120 = vmatpush.msra.mxu0 0.0
    %121 = vmatpush.msra.mxu0 0.0
    %122 = vmatpush.msra.mxu0 0.0
    %123 = vmatpush.msra.mxu0 %v63
    %124 = vmatpush.msra.mxu0 %v55
    %125 = vmatmul.f32.gmra.mxu0 %v104
    %v126 = vpop.f32.mrf.mxu0
    %v127 = vadd.f32 %v95, %v126
    %128 = vmatmul.f32.gmra.mxu0 %v107
    %v129 = vpop.f32.mrf.mxu0
    %v130 = vadd.f32 %v100, %v129
    %131 = vdwg.mxu0
    %132 = vmatpush.msra.mxu0 0.0
    %133 = vmatpush.msra.mxu0 0.0
    %134 = vmatpush.msra.mxu0 0.0
    %135 = vmatpush.msra.mxu0 0.0
    %136 = vmatpush.msra.mxu0 0.0
    %137 = vmatpush.msra.mxu0 0.0
    %138 = vmatpush.msra.mxu0 0.0
    %139 = vmatpush.msra.mxu0 0.0
    %140 = vmatpush.msra.mxu0 0.0
    %141 = vmatpush.msra.mxu0 0.0
    %142 = vmatpush.msra.mxu0 0.0
    %143 = vmatpush.msra.mxu0 0.0
    %144 = vmatpush.msra.mxu0 0.0
    %145 = vmatpush.msra.mxu0 0.0
    %146 = vmatpush.msra.mxu0 %v64
    %147 = vmatpush.msra.mxu0 %v56
    %148 = vmatmul.f32.gmra.mxu0 %v104
    %v149 = vpop.f32.mrf.mxu0
    %v150 = vadd.f32 %v95, %v149
    %151 = vmatmul.f32.gmra.mxu0 %v107
    %v152 = vpop.f32.mrf.mxu0
    %v153 = vadd.f32 %v100, %v152
    %154 = vdwg.mxu0
    %155 = vmatpush.msra.mxu0 0.0
    %156 = vmatpush.msra.mxu0 0.0
    %157 = vmatpush.msra.mxu0 0.0
    %158 = vmatpush.msra.mxu0 0.0
    %159 = vmatpush.msra.mxu0 0.0
    %160 = vmatpush.msra.mxu0 0.0
    %161 = vmatpush.msra.mxu0 0.0
    %162 = vmatpush.msra.mxu0 0.0
    %163 = vmatpush.msra.mxu0 0.0
    %164 = vmatpush.msra.mxu0 0.0
    %165 = vmatpush.msra.mxu0 0.0
    %166 = vmatpush.msra.mxu0 0.0
    %167 = vmatpush.msra.mxu0 0.0
    %168 = vmatpush.msra.mxu0 0.0
    %169 = vmatpush.msra.mxu0 %v65
    %170 = vmatpush.msra.mxu0 %v57
    %171 = vmatmul.f32.gmra.mxu0 %v104
    %v172 = vpop.f32.mrf.mxu0
    %v173 = vadd.f32 %v95, %v172
    %174 = vmatmul.f32.gmra.mxu0 %v107
    %v175 = vpop.f32.mrf.mxu0
    %v176 = vadd.f32 %v100, %v175
    %177 = vdwg.mxu0
    %178 = vmatpush.msra.mxu0 0.0
    %179 = vmatpush.msra.mxu0 0.0
    %180 = vmatpush.msra.mxu0 0.0
    %181 = vmatpush.msra.mxu0 0.0
    %182 = vmatpush.msra.mxu0 0.0
    %183 = vmatpush.msra.mxu0 0.0
    %184 = vmatpush.msra.mxu0 0.0
    %185 = vmatpush.msra.mxu0 0.0
    %186 = vmatpush.msra.mxu0 0.0
    %187 = vmatpush.msra.mxu0 0.0
    %188 = vmatpush.msra.mxu0 0.0
    %189 = vmatpush.msra.mxu0 0.0
    %190 = vmatpush.msra.mxu0 0.0
    %191 = vmatpush.msra.mxu0 0.0
    %192 = vmatpush.msra.mxu0 %v66
    %193 = vmatpush.msra.mxu0 %v58
    %194 = vmatmul.f32.gmra.mxu0 %v104
    %v195 = vpop.f32.mrf.mxu0
    %v196 = vadd.f32 %v95, %v195
    %197 = vmatmul.f32.gmra.mxu0 %v107
    %v198 = vpop.f32.mrf.mxu0
    %v199 = vadd.f32 %v100, %v198
    %200 = vdwg.mxu0
    %201 = vmatpush.msra.mxu0 0.0
    %202 = vmatpush.msra.mxu0 0.0
    %203 = vmatpush.msra.mxu0 0.0
    %204 = vmatpush.msra.mxu0 0.0
    %205 = vmatpush.msra.mxu0 0.0
    %206 = vmatpush.msra.mxu0 0.0
    %207 = vmatpush.msra.mxu0 0.0
    %208 = vmatpush.msra.mxu0 0.0
    %209 = vmatpush.msra.mxu0 0.0
    %210 = vmatpush.msra.mxu0 0.0
    %211 = vmatpush.msra.mxu0 0.0
    %212 = vmatpush.msra.mxu0 0.0
    %213 = vmatpush.msra.mxu0 0.0
    %214 = vmatpush.msra.mxu0 0.0
    %215 = vmatpush.msra.mxu0 %v67
    %216 = vmatpush.msra.mxu0 %v59
    %217 = vmatmul.f32.gmra.mxu0 %v104
    %v218 = vpop.f32.mrf.mxu0
    %v219 = vadd.f32 %v95, %v218
    %220 = vmatmul.f32.gmra.mxu0 %v107
    %v221 = vpop.f32.mrf.mxu0
    %v222 = vadd.f32 %v100, %v221
    %223 = vdwg.mxu0
    %224 = vmatpush.msra.mxu0 0.0
    %225 = vmatpush.msra.mxu0 0.0
    %226 = vmatpush.msra.mxu0 0.0
    %227 = vmatpush.msra.mxu0 0.0
    %228 = vmatpush.msra.mxu0 0.0
    %229 = vmatpush.msra.mxu0 0.0
    %230 = vmatpush.msra.mxu0 0.0
    %231 = vmatpush.msra.mxu0 0.0
    %232 = vmatpush.msra.mxu0 0.0
    %233 = vmatpush.msra.mxu0 0.0
    %234 = vmatpush.msra.mxu0 0.0
    %235 = vmatpush.msra.mxu0 0.0
    %236 = vmatpush.msra.mxu0 0.0
    %237 = vmatpush.msra.mxu0 0.0
    %238 = vmatpush.msra.mxu0 %v68
    %239 = vmatpush.msra.mxu0 %v60
    %240 = vmatmul.f32.gmra.mxu0 %v104
    %v241 = vpop.f32.mrf.mxu0
    %v242 = vadd.f32 %v95, %v241
    %243 = vmatmul.f32.gmra.mxu0 %v107
    %v244 = vpop.f32.mrf.mxu0
    %v245 = vadd.f32 %v100, %v244
    %246 = vdwg.mxu0
    %247 = vmatpush.msra.mxu0 0.0
    %248 = vmatpush.msra.mxu0 0.0
    %249 = vmatpush.msra.mxu0 0.0
    %250 = vmatpush.msra.mxu0 0.0
    %251 = vmatpush.msra.mxu0 0.0
    %252 = vmatpush.msra.mxu0 0.0
    %253 = vmatpush.msra.mxu0 0.0
    %254 = vmatpush.msra.mxu0 0.0
    %255 = vmatpush.msra.mxu0 0.0
    %256 = vmatpush.msra.mxu0 0.0
    %257 = vmatpush.msra.mxu0 0.0
    %258 = vmatpush.msra.mxu0 0.0
    %259 = vmatpush.msra.mxu0 0.0
    %260 = vmatpush.msra.mxu0 0.0
    %261 = vmatpush.msra.mxu0 %v69
    %262 = vmatpush.msra.mxu0 %v61
    %263 = vmatmul.f32.gmra.mxu0 %v104
    %v264 = vpop.f32.mrf.mxu0
    %v265 = vadd.f32 %v95, %v264
    %266 = vmatmul.f32.gmra.mxu0 %v107
    %v267 = vpop.f32.mrf.mxu0
    %v268 = vadd.f32 %v100, %v267
    %269 = vdwg.mxu0
    %270 = vmatpush.msra.mxu0 0.0
    %271 = vmatpush.msra.mxu0 0.0
    %272 = vmatpush.msra.mxu0 0.0
    %273 = vmatpush.msra.mxu0 0.0
    %274 = vmatpush.msra.mxu0 0.0
    %275 = vmatpush.msra.mxu0 0.0
    %276 = vmatpush.msra.mxu0 0.0
    %277 = vmatpush.msra.mxu0 0.0
    %278 = vmatpush.msra.mxu0 0.0
    %279 = vmatpush.msra.mxu0 0.0
    %280 = vmatpush.msra.mxu0 0.0
    %281 = vmatpush.msra.mxu0 0.0
    %282 = vmatpush.msra.mxu0 0.0
    %283 = vmatpush.msra.mxu0 0.0
    %284 = vmatpush.msra.mxu0 %v70
    %285 = vmatpush.msra.mxu0 %v62
    %286 = vmatmul.f32.gmra.mxu0 %v104
    %v287 = vpop.f32.mrf.mxu0
    %v288 = vadd.f32 %v95, %v287
    %289 = vmatmul.f32.gmra.mxu0 %v107
    %v290 = vpop.f32.mrf.mxu0
    %v291 = vadd.f32 %v100, %v290
    %292 = vdwg.mxu0
    %v293 = vsel %vm80, 1, 0
    %v294 = vsel %vm81, 1, 0
    %v295 = vsel %vm82, 1, 0
    %v296 = vsel %vm83, 1, 0
    %v297 = vsel %vm84, 1, 0
    %v298 = vsel %vm85, 1, 0
    %v299 = vsel %vm86, 1, 0
    %v300 = vsel %vm87, 1, 0
    %vm301 = vcmp.eq.s32.totalorder %v293, 1
    %vm302 = vcmp.eq.s32.totalorder %v294, 1
    %vm303 = vcmp.eq.s32.totalorder %v295, 1
    %vm304 = vcmp.eq.s32.totalorder %v296, 1
    %vm305 = vcmp.eq.s32.totalorder %v297, 1
    %vm306 = vcmp.eq.s32.totalorder %v298, 1
    %vm307 = vcmp.eq.s32.totalorder %v299, 1
    %vm308 = vcmp.eq.s32.totalorder %v300, 1
    %v309 = vsel %vm301, %v127, 0.0
    %v310 = vsel %vm302, %v150, 0.0
    %v311 = vsel %vm303, %v173, 0.0
    %v312 = vsel %vm304, %v196, 0.0
    %v313 = vsel %vm305, %v219, 0.0
    %v314 = vsel %vm306, %v242, 0.0
    %v315 = vsel %vm307, %v265, 0.0
    %v316 = vsel %vm308, %v288, 0.0
    %v317 = vsel %vm301, %v130, 0.0
    %v318 = vsel %vm302, %v153, 0.0
    %v319 = vsel %vm303, %v176, 0.0
    %v320 = vsel %vm304, %v199, 0.0
    %v321 = vsel %vm305, %v222, 0.0
    %v322 = vsel %vm306, %v245, 0.0
    %v323 = vsel %vm307, %v268, 0.0
    %v324 = vsel %vm308, %v291, 0.0
    %v325 = vadd.f32 %v309, %v310
    %v326 = vadd.f32 %v325, %v311
    %v327 = vadd.f32 %v326, %v312
    %v328 = vadd.f32 %v327, %v313
    %v329 = vadd.f32 %v328, %v314
    %v330 = vadd.f32 %v329, %v315
    %v331 = vadd.f32 %v330, %v316
    %332 = vadd.xlane.f32.xlu0 %v331
    %v333 = vpop.xlane.xlu0 %332
    %v334 = vadd.f32 %v317, %v318
    %v335 = vadd.f32 %v334, %v319
    %v336 = vadd.f32 %v335, %v320
    %v337 = vadd.f32 %v336, %v321
    %v338 = vadd.f32 %v337, %v322
    %v339 = vadd.f32 %v338, %v323
    %v340 = vadd.f32 %v339, %v324
    %341 = vadd.xlane.f32.xlu0 %v340
    %v342 = vpop.xlane.xlu0 %341
    %v343 = vmul.f32 %v333, 0.001
    %v344 = vmul.f32 %v342, 0.001
    %v345 = vmul.f32 %v309, %v309
    %v346 = vmul.f32 %v310, %v310
    %v347 = vmul.f32 %v311, %v311
    %v348 = vmul.f32 %v312, %v312
    %v349 = vmul.f32 %v313, %v313
    %v350 = vmul.f32 %v314, %v314
    %v351 = vmul.f32 %v315, %v315
    %v352 = vmul.f32 %v316, %v316
    %v353 = vmul.f32 %v317, %v317
    %v354 = vmul.f32 %v318, %v318
    %v355 = vmul.f32 %v319, %v319
    %v356 = vmul.f32 %v320, %v320
    %v357 = vmul.f32 %v321, %v321
    %v358 = vmul.f32 %v322, %v322
    %v359 = vmul.f32 %v323, %v323
    %v360 = vmul.f32 %v324, %v324
    %v361 = vadd.f32 %v345, %v346
    %v362 = vadd.f32 %v361, %v347
    %v363 = vadd.f32 %v362, %v348
    %v364 = vadd.f32 %v363, %v349
    %v365 = vadd.f32 %v364, %v350
    %v366 = vadd.f32 %v365, %v351
    %v367 = vadd.f32 %v366, %v352
    %368 = vadd.xlane.f32.xlu0 %v367
    %v369 = vpop.xlane.xlu0 %368
    %v370 = vadd.f32 %v353, %v354
    %v371 = vadd.f32 %v370, %v355
    %v372 = vadd.f32 %v371, %v356
    %v373 = vadd.f32 %v372, %v357
    %v374 = vadd.f32 %v373, %v358
    %v375 = vadd.f32 %v374, %v359
    %v376 = vadd.f32 %v375, %v360
    %377 = vadd.xlane.f32.xlu0 %v376
    %v378 = vpop.xlane.xlu0 %377
    %v379 = vmul.f32 %v369, 0.001
    %v380 = vmul.f32 %v378, 0.001
    %v381 = vmul.f32 %v343, %v343
    %v382 = vmul.f32 %v344, %v344
    %v383 = vsub.f32 %v379, %v381
    %v384 = vsub.f32 %v380, %v382
    %v385 = vld [vmem:[%s3] sm:$0xff]
    %v386 = vld [vmem:[%s3 + $0x8] sm:$0xff]
    %v387 = vld [vmem:[%s4] sm:$0xff]
    %v388 = vld [vmem:[%s4 + $0x8] sm:$0xff]
    %v389 = vld [vmem:[%s5] sm:$0xff]
    %v390 = vld [vmem:[%s5 + $0x8] sm:$0xff]
    %v391 = vld [vmem:[%s6] sm:$0xff]
    %v392 = vld [vmem:[%s6 + $0x8] sm:$0xff]
    %v393 = vadd.f32 %v383, 1e-05
    %v394 = vadd.f32 %v384, 1e-05
    %v395 = vrsqrt.pop %v393
    %v396 = vmul.f32 %v395, %v393
    %v397 = vmul.f32 %v396, %v395
    %v398 = vmul.f32 0.5, %v397
    %v399 = vsub.f32 1.5, %v398
    %v400 = vmul.f32 %v395, %v399
    %vm401 = vweird.f32 %v393
    %vm402 = vweird.f32 %v395
    %vm403 = vmor %vm401, %vm402
    %v404 = vsel %vm403, %v395, %v400
    %v405 = vrsqrt.pop %v394
    %v406 = vmul.f32 %v405, %v394
    %v407 = vmul.f32 %v406, %v405
    %v408 = vmul.f32 0.5, %v407
    %v409 = vsub.f32 1.5, %v408
    %v410 = vmul.f32 %v405, %v409
    %vm411 = vweird.f32 %v394
    %vm412 = vweird.f32 %v405
    %vm413 = vmor %vm411, %vm412
    %v414 = vsel %vm413, %v405, %v410
    %v415 = vmul.f32 %v385, %v404
    %v416 = vmul.f32 %v386, %v414
    %v417 = vmul.f32 %v343, %v415
    %v418 = vmul.f32 %v344, %v416
    %v419 = vsub.f32 %v387, %v417
    %v420 = vsub.f32 %v388, %v418
    %421 = vxpose.xlu0.b32.start [1/16] %v415, 128
    %422 = vxpose.xlu0.b32.cont [2/16] %v416, 128
    %423 = vxpose.xlu0.b32.cont [3/16] 0.0, 128
    %424 = vxpose.xlu0.b32.cont [4/16] 0.0, 128
    %425 = vxpose.xlu0.b32.cont [5/16] 0.0, 128
    %426 = vxpose.xlu0.b32.cont [6/16] 0.0, 128
    %427 = vxpose.xlu0.b32.cont [7/16] 0.0, 128
    %428 = vxpose.xlu0.b32.cont [8/16] 0.0, 128
    %429 = vxpose.xlu0.b32.cont [9/16] 0.0, 128
    %430 = vxpose.xlu0.b32.cont [10/16] 0.0, 128
    %431 = vxpose.xlu0.b32.cont [11/16] 0.0, 128
    %432 = vxpose.xlu0.b32.cont [12/16] 0.0, 128
    %433 = vxpose.xlu0.b32.cont [13/16] 0.0, 128
    %434 = vxpose.xlu0.b32.cont [14/16] 0.0, 128
    %435 = vxpose.xlu0.b32.cont [15/16] 0.0, 128
    %436 = vxpose.xlu0.b32.end [16/16] 0.0, 128
    %v437 = vpop.trf.xlu0
    %v438 = vpop.trf.xlu0
    %v439 = vpop.trf.xlu0
    %v440 = vpop.trf.xlu0
    %v441 = vpop.trf.xlu0
    %v442 = vpop.trf.xlu0
    %v443 = vpop.trf.xlu0
    %v444 = vpop.trf.xlu0
    %v445 = vpop.trf.xlu0
    %v446 = vpop.trf.xlu0
    %v447 = vpop.trf.xlu0
    %v448 = vpop.trf.xlu0
    %v449 = vpop.trf.xlu0
    %v450 = vpop.trf.xlu0
    %v451 = vpop.trf.xlu0
    %v452 = vpop.trf.xlu0
    %v453 = vperm.slane %v437, 0
    %v454 = vmul.f32 %v389, %v453
    %v455 = vmul.f32 %v390, %v453
    %v457 = vsel %vm102, %v389, 0
    %v460 = vsel %vm102, %v390, 0
    %462 = vmatpush.msra.mxu0 0.0
    %463 = vmatpush.msra.mxu0 0.0
    %464 = vmatpush.msra.mxu0 0.0
    %465 = vmatpush.msra.mxu0 0.0
    %466 = vmatpush.msra.mxu0 0.0
    %467 = vmatpush.msra.mxu0 0.0
    %468 = vmatpush.msra.mxu0 0.0
    %469 = vmatpush.msra.mxu0 0.0
    %470 = vmatpush.msra.mxu0 0.0
    %471 = vmatpush.msra.mxu0 0.0
    %472 = vmatpush.msra.mxu0 0.0
    %473 = vmatpush.msra.mxu0 0.0
    %474 = vmatpush.msra.mxu0 0.0
    %475 = vmatpush.msra.mxu0 0.0
    %476 = vmatpush.msra.mxu0 %v420
    %477 = vmatpush.msra.mxu0 %v419
    %478 = vmatmul.f32.gmra.mxu0 %v457
    %v479 = vpop.f32.mrf.mxu0
    %v480 = vadd.f32 %v391, %v479
    %481 = vmatmul.f32.gmra.mxu0 %v460
    %v482 = vpop.f32.mrf.mxu0
    %v483 = vadd.f32 %v392, %v482
    %484 = vdwg.mxu0
    %486 = vset.pattern.permute.xlu0 0
    %487 = vperm.xlu0 %486, %v480
    %v488 = vpop.permute.xlu0 %487
    %491 = vset.pattern.permute.xlu0 0
    %492 = vperm.xlu0 %491, %v483
    %v493 = vpop.permute.xlu0 %492
    %v496 = vsel %vm102, %v454, 0
    %v499 = vsel %vm102, %v455, 0
    %501 = vmatpush.msra.mxu0 0.0
    %502 = vmatpush.msra.mxu0 0.0
    %503 = vmatpush.msra.mxu0 0.0
    %504 = vmatpush.msra.mxu0 0.0
    %505 = vmatpush.msra.mxu0 0.0
    %506 = vmatpush.msra.mxu0 0.0
    %507 = vmatpush.msra.mxu0 0.0
    %508 = vmatpush.msra.mxu0 0.0
    %509 = vmatpush.msra.mxu0 0.0
    %510 = vmatpush.msra.mxu0 0.0
    %511 = vmatpush.msra.mxu0 0.0
    %512 = vmatpush.msra.mxu0 0.0
    %513 = vmatpush.msra.mxu0 0.0
    %514 = vmatpush.msra.mxu0 0.0
    %515 = vmatpush.msra.mxu0 %v130
    %516 = vmatpush.msra.mxu0 %v127
    %517 = vmatmul.f32.gmra.mxu0 %v496
    %v518 = vpop.f32.mrf.mxu0
    %v519 = vadd.f32 %v488, %v518
    %520 = vmatmul.f32.gmra.mxu0 %v499
    %v521 = vpop.f32.mrf.mxu0
    %v522 = vadd.f32 %v493, %v521
    %523 = vdwg.mxu0
    %524 = vmatpush.msra.mxu0 0.0
    %525 = vmatpush.msra.mxu0 0.0
    %526 = vmatpush.msra.mxu0 0.0
    %527 = vmatpush.msra.mxu0 0.0
    %528 = vmatpush.msra.mxu0 0.0
    %529 = vmatpush.msra.mxu0 0.0
    %530 = vmatpush.msra.mxu0 0.0
    %531 = vmatpush.msra.mxu0 0.0
    %532 = vmatpush.msra.mxu0 0.0
    %533 = vmatpush.msra.mxu0 0.0
    %534 = vmatpush.msra.mxu0 0.0
    %535 = vmatpush.msra.mxu0 0.0
    %536 = vmatpush.msra.mxu0 0.0
    %537 = vmatpush.msra.mxu0 0.0
    %538 = vmatpush.msra.mxu0 %v153
    %539 = vmatpush.msra.mxu0 %v150
    %540 = vmatmul.f32.gmra.mxu0 %v496
    %v541 = vpop.f32.mrf.mxu0
    %v542 = vadd.f32 %v488, %v541
    %543 = vmatmul.f32.gmra.mxu0 %v499
    %v544 = vpop.f32.mrf.mxu0
    %v545 = vadd.f32 %v493, %v544
    %546 = vdwg.mxu0
    %547 = vmatpush.msra.mxu0 0.0
    %548 = vmatpush.msra.mxu0 0.0
    %549 = vmatpush.msra.mxu0 0.0
    %550 = vmatpush.msra.mxu0 0.0
    %551 = vmatpush.msra.mxu0 0.0
    %552 = vmatpush.msra.mxu0 0.0
    %553 = vmatpush.msra.mxu0 0.0
    %554 = vmatpush.msra.mxu0 0.0
    %555 = vmatpush.msra.mxu0 0.0
    %556 = vmatpush.msra.mxu0 0.0
    %557 = vmatpush.msra.mxu0 0.0
    %558 = vmatpush.msra.mxu0 0.0
    %559 = vmatpush.msra.mxu0 0.0
    %560 = vmatpush.msra.mxu0 0.0
    %561 = vmatpush.msra.mxu0 %v176
    %562 = vmatpush.msra.mxu0 %v173
    %563 = vmatmul.f32.gmra.mxu0 %v496
    %v564 = vpop.f32.mrf.mxu0
    %v565 = vadd.f32 %v488, %v564
    %566 = vmatmul.f32.gmra.mxu0 %v499
    %v567 = vpop.f32.mrf.mxu0
    %v568 = vadd.f32 %v493, %v567
    %569 = vdwg.mxu0
    %570 = vmatpush.msra.mxu0 0.0
    %571 = vmatpush.msra.mxu0 0.0
    %572 = vmatpush.msra.mxu0 0.0
    %573 = vmatpush.msra.mxu0 0.0
    %574 = vmatpush.msra.mxu0 0.0
    %575 = vmatpush.msra.mxu0 0.0
    %576 = vmatpush.msra.mxu0 0.0
    %577 = vmatpush.msra.mxu0 0.0
    %578 = vmatpush.msra.mxu0 0.0
    %579 = vmatpush.msra.mxu0 0.0
    %580 = vmatpush.msra.mxu0 0.0
    %581 = vmatpush.msra.mxu0 0.0
    %582 = vmatpush.msra.mxu0 0.0
    %583 = vmatpush.msra.mxu0 0.0
    %584 = vmatpush.msra.mxu0 %v199
    %585 = vmatpush.msra.mxu0 %v196
    %586 = vmatmul.f32.gmra.mxu0 %v496
    %v587 = vpop.f32.mrf.mxu0
    %v588 = vadd.f32 %v488, %v587
    %589 = vmatmul.f32.gmra.mxu0 %v499
    %v590 = vpop.f32.mrf.mxu0
    %v591 = vadd.f32 %v493, %v590
    %592 = vdwg.mxu0
    %593 = vmatpush.msra.mxu0 0.0
    %594 = vmatpush.msra.mxu0 0.0
    %595 = vmatpush.msra.mxu0 0.0
    %596 = vmatpush.msra.mxu0 0.0
    %597 = vmatpush.msra.mxu0 0.0
    %598 = vmatpush.msra.mxu0 0.0
    %599 = vmatpush.msra.mxu0 0.0
    %600 = vmatpush.msra.mxu0 0.0
    %601 = vmatpush.msra.mxu0 0.0
    %602 = vmatpush.msra.mxu0 0.0
    %603 = vmatpush.msra.mxu0 0.0
    %604 = vmatpush.msra.mxu0 0.0
    %605 = vmatpush.msra.mxu0 0.0
    %606 = vmatpush.msra.mxu0 0.0
    %607 = vmatpush.msra.mxu0 %v222
    %608 = vmatpush.msra.mxu0 %v219
    %609 = vmatmul.f32.gmra.mxu0 %v496
    %v610 = vpop.f32.mrf.mxu0
    %v611 = vadd.f32 %v488, %v610
    %612 = vmatmul.f32.gmra.mxu0 %v499
    %v613 = vpop.f32.mrf.mxu0
    %v614 = vadd.f32 %v493, %v613
    %615 = vdwg.mxu0
    %616 = vmatpush.msra.mxu0 0.0
    %617 = vmatpush.msra.mxu0 0.0
    %618 = vmatpush.msra.mxu0 0.0
    %619 = vmatpush.msra.mxu0 0.0
    %620 = vmatpush.msra.mxu0 0.0
    %621 = vmatpush.msra.mxu0 0.0
    %622 = vmatpush.msra.mxu0 0.0
    %623 = vmatpush.msra.mxu0 0.0
    %624 = vmatpush.msra.mxu0 0.0
    %625 = vmatpush.msra.mxu0 0.0
    %626 = vmatpush.msra.mxu0 0.0
    %627 = vmatpush.msra.mxu0 0.0
    %628 = vmatpush.msra.mxu0 0.0
    %629 = vmatpush.msra.mxu0 0.0
    %630 = vmatpush.msra.mxu0 %v245
    %631 = vmatpush.msra.mxu0 %v242
    %632 = vmatmul.f32.gmra.mxu0 %v496
    %v633 = vpop.f32.mrf.mxu0
    %v634 = vadd.f32 %v488, %v633
    %635 = vmatmul.f32.gmra.mxu0 %v499
    %v636 = vpop.f32.mrf.mxu0
    %v637 = vadd.f32 %v493, %v636
    %638 = vdwg.mxu0
    %639 = vmatpush.msra.mxu0 0.0
    %640 = vmatpush.msra.mxu0 0.0
    %641 = vmatpush.msra.mxu0 0.0
    %642 = vmatpush.msra.mxu0 0.0
    %643 = vmatpush.msra.mxu0 0.0
    %644 = vmatpush.msra.mxu0 0.0
    %645 = vmatpush.msra.mxu0 0.0
    %646 = vmatpush.msra.mxu0 0.0
    %647 = vmatpush.msra.mxu0 0.0
    %648 = vmatpush.msra.mxu0 0.0
    %649 = vmatpush.msra.mxu0 0.0
    %650 = vmatpush.msra.mxu0 0.0
    %651 = vmatpush.msra.mxu0 0.0
    %652 = vmatpush.msra.mxu0 0.0
    %653 = vmatpush.msra.mxu0 %v268
    %654 = vmatpush.msra.mxu0 %v265
    %655 = vmatmul.f32.gmra.mxu0 %v496
    %v656 = vpop.f32.mrf.mxu0
    %v657 = vadd.f32 %v488, %v656
    %658 = vmatmul.f32.gmra.mxu0 %v499
    %v659 = vpop.f32.mrf.mxu0
    %v660 = vadd.f32 %v493, %v659
    %661 = vdwg.mxu0
    %662 = vmatpush.msra.mxu0 0.0
    %663 = vmatpush.msra.mxu0 0.0
    %664 = vmatpush.msra.mxu0 0.0
    %665 = vmatpush.msra.mxu0 0.0
    %666 = vmatpush.msra.mxu0 0.0
    %667 = vmatpush.msra.mxu0 0.0
    %668 = vmatpush.msra.mxu0 0.0
    %669 = vmatpush.msra.mxu0 0.0
    %670 = vmatpush.msra.mxu0 0.0
    %671 = vmatpush.msra.mxu0 0.0
    %672 = vmatpush.msra.mxu0 0.0
    %673 = vmatpush.msra.mxu0 0.0
    %674 = vmatpush.msra.mxu0 0.0
    %675 = vmatpush.msra.mxu0 0.0
    %676 = vmatpush.msra.mxu0 %v291
    %677 = vmatpush.msra.mxu0 %v288
    %678 = vmatmul.f32.gmra.mxu0 %v496
    %v679 = vpop.f32.mrf.mxu0
    %v680 = vadd.f32 %v488, %v679
    %681 = vmatmul.f32.gmra.mxu0 %v499
    %v682 = vpop.f32.mrf.mxu0
    %v683 = vadd.f32 %v493, %v682
    %684 = vdwg.mxu0
    %v685 = vsel %vm301, %v519, 0.0
    %v686 = vsel %vm302, %v542, 0.0
    %v687 = vsel %vm303, %v565, 0.0
    %v688 = vsel %vm304, %v588, 0.0
    %v689 = vsel %vm305, %v611, 0.0
    %v690 = vsel %vm306, %v634, 0.0
    %v691 = vsel %vm307, %v657, 0.0
    %v692 = vsel %vm308, %v680, 0.0
    %v693 = vsel %vm301, %v522, 0.0
    %v694 = vsel %vm302, %v545, 0.0
    %v695 = vsel %vm303, %v568, 0.0
    %v696 = vsel %vm304, %v591, 0.0
    %v697 = vsel %vm305, %v614, 0.0
    %v698 = vsel %vm306, %v637, 0.0
    %v699 = vsel %vm307, %v660, 0.0
    %v700 = vsel %vm308, %v683, 0.0
    %v701 = vadd.f32 %v685, %v686
    %v702 = vadd.f32 %v701, %v687
    %v703 = vadd.f32 %v702, %v688
    %v704 = vadd.f32 %v703, %v689
    %v705 = vadd.f32 %v704, %v690
    %v706 = vadd.f32 %v705, %v691
    %v707 = vadd.f32 %v706, %v692
    %708 = vadd.xlane.f32.xlu0 %v707
    %v709 = vpop.xlane.xlu0 %708
    %v710 = vadd.f32 %v693, %v694
    %v711 = vadd.f32 %v710, %v695
    %v712 = vadd.f32 %v711, %v696
    %v713 = vadd.f32 %v712, %v697
    %v714 = vadd.f32 %v713, %v698
    %v715 = vadd.f32 %v714, %v699
    %v716 = vadd.f32 %v715, %v700
    %717 = vadd.xlane.f32.xlu0 %v716
    %v718 = vpop.xlane.xlu0 %717
    %v719 = vmul.f32 %v709, 0.001
    %v720 = vmul.f32 %v718, 0.001
    %v721 = vmul.f32 %v685, %v685
    %v722 = vmul.f32 %v686, %v686
    %v723 = vmul.f32 %v687, %v687
    %v724 = vmul.f32 %v688, %v688
    %v725 = vmul.f32 %v689, %v689
    %v726 = vmul.f32 %v690, %v690
    %v727 = vmul.f32 %v691, %v691
    %v728 = vmul.f32 %v692, %v692
    %v729 = vmul.f32 %v693, %v693
    %v730 = vmul.f32 %v694, %v694
    %v731 = vmul.f32 %v695, %v695
    %v732 = vmul.f32 %v696, %v696
    %v733 = vmul.f32 %v697, %v697
    %v734 = vmul.f32 %v698, %v698
    %v735 = vmul.f32 %v699, %v699
    %v736 = vmul.f32 %v700, %v700
    %v737 = vadd.f32 %v721, %v722
    %v738 = vadd.f32 %v737, %v723
    %v739 = vadd.f32 %v738, %v724
    %v740 = vadd.f32 %v739, %v725
    %v741 = vadd.f32 %v740, %v726
    %v742 = vadd.f32 %v741, %v727
    %v743 = vadd.f32 %v742, %v728
    %744 = vadd.xlane.f32.xlu0 %v743
    %v745 = vpop.xlane.xlu0 %744
    %v746 = vadd.f32 %v729, %v730
    %v747 = vadd.f32 %v746, %v731
    %v748 = vadd.f32 %v747, %v732
    %v749 = vadd.f32 %v748, %v733
    %v750 = vadd.f32 %v749, %v734
    %v751 = vadd.f32 %v750, %v735
    %v752 = vadd.f32 %v751, %v736
    %753 = vadd.xlane.f32.xlu0 %v752
    %v754 = vpop.xlane.xlu0 %753
    %v755 = vmul.f32 %v745, 0.001
    %v756 = vmul.f32 %v754, 0.001
    %v757 = vmul.f32 %v719, %v719
    %v758 = vmul.f32 %v720, %v720
    %v759 = vsub.f32 %v755, %v757
    %v760 = vsub.f32 %v756, %v758
    %v761 = vld [vmem:[%s7] sm:$0xff]
    %v762 = vld [vmem:[%s7 + $0x8] sm:$0xff]
    %v763 = vld [vmem:[%s8] sm:$0xff]
    %v764 = vld [vmem:[%s8 + $0x8] sm:$0xff]
    %v765 = vld [vmem:[%s9] sm:$0xff]
    %v766 = vld [vmem:[%s9 + $0x8] sm:$0xff]
    %v767 = vld [vmem:[%s10] sm:$0xff]
    %v768 = vld [vmem:[%s10 + $0x8] sm:$0xff]
    %v769 = vadd.f32 %v759, 1e-05
    %v770 = vadd.f32 %v760, 1e-05
    %v771 = vrsqrt.pop %v769
    %v772 = vmul.f32 %v771, %v769
    %v773 = vmul.f32 %v772, %v771
    %v774 = vmul.f32 0.5, %v773
    %v775 = vsub.f32 1.5, %v774
    %v776 = vmul.f32 %v771, %v775
    %vm777 = vweird.f32 %v769
    %vm778 = vweird.f32 %v771
    %vm779 = vmor %vm777, %vm778
    %v780 = vsel %vm779, %v771, %v776
    %v781 = vrsqrt.pop %v770
    %v782 = vmul.f32 %v781, %v770
    %v783 = vmul.f32 %v782, %v781
    %v784 = vmul.f32 0.5, %v783
    %v785 = vsub.f32 1.5, %v784
    %v786 = vmul.f32 %v781, %v785
    %vm787 = vweird.f32 %v770
    %vm788 = vweird.f32 %v781
    %vm789 = vmor %vm787, %vm788
    %v790 = vsel %vm789, %v781, %v786
    %v791 = vmul.f32 %v761, %v780
    %v792 = vmul.f32 %v762, %v790
    %v793 = vmul.f32 %v719, %v791
    %v794 = vmul.f32 %v720, %v792
    %v795 = vsub.f32 %v763, %v793
    %v796 = vsub.f32 %v764, %v794
    %797 = vxpose.xlu0.b32.start [1/16] %v791, 128
    %798 = vxpose.xlu0.b32.cont [2/16] %v792, 128
    %799 = vxpose.xlu0.b32.cont [3/16] 0.0, 128
    %800 = vxpose.xlu0.b32.cont [4/16] 0.0, 128
    %801 = vxpose.xlu0.b32.cont [5/16] 0.0, 128
    %802 = vxpose.xlu0.b32.cont [6/16] 0.0, 128
    %803 = vxpose.xlu0.b32.cont [7/16] 0.0, 128
    %804 = vxpose.xlu0.b32.cont [8/16] 0.0, 128
    %805 = vxpose.xlu0.b32.cont [9/16] 0.0, 128
    %806 = vxpose.xlu0.b32.cont [10/16] 0.0, 128
    %807 = vxpose.xlu0.b32.cont [11/16] 0.0, 128
    %808 = vxpose.xlu0.b32.cont [12/16] 0.0, 128
    %809 = vxpose.xlu0.b32.cont [13/16] 0.0, 128
    %810 = vxpose.xlu0.b32.cont [14/16] 0.0, 128
    %811 = vxpose.xlu0.b32.cont [15/16] 0.0, 128
    %812 = vxpose.xlu0.b32.end [16/16] 0.0, 128
    %v813 = vpop.trf.xlu0
    %v814 = vpop.trf.xlu0
    %v815 = vpop.trf.xlu0
    %v816 = vpop.trf.xlu0
    %v817 = vpop.trf.xlu0
    %v818 = vpop.trf.xlu0
    %v819 = vpop.trf.xlu0
    %v820 = vpop.trf.xlu0
    %v821 = vpop.trf.xlu0
    %v822 = vpop.trf.xlu0
    %v823 = vpop.trf.xlu0
    %v824 = vpop.trf.xlu0
    %v825 = vpop.trf.xlu0
    %v826 = vpop.trf.xlu0
    %v827 = vpop.trf.xlu0
    %v828 = vpop.trf.xlu0
    %v829 = vperm.slane %v813, 0
    %v830 = vmul.f32 %v765, %v829
    %v831 = vmul.f32 %v766, %v829
    %v833 = vsel %vm102, %v765, 0
    %v836 = vsel %vm102, %v766, 0
    %838 = vmatpush.msra.mxu0 0.0
    %839 = vmatpush.msra.mxu0 0.0
    %840 = vmatpush.msra.mxu0 0.0
    %841 = vmatpush.msra.mxu0 0.0
    %842 = vmatpush.msra.mxu0 0.0
    %843 = vmatpush.msra.mxu0 0.0
    %844 = vmatpush.msra.mxu0 0.0
    %845 = vmatpush.msra.mxu0 0.0
    %846 = vmatpush.msra.mxu0 0.0
    %847 = vmatpush.msra.mxu0 0.0
    %848 = vmatpush.msra.mxu0 0.0
    %849 = vmatpush.msra.mxu0 0.0
    %850 = vmatpush.msra.mxu0 0.0
    %851 = vmatpush.msra.mxu0 0.0
    %852 = vmatpush.msra.mxu0 %v796
    %853 = vmatpush.msra.mxu0 %v795
    %854 = vmatmul.f32.gmra.mxu0 %v833
    %v855 = vpop.f32.mrf.mxu0
    %v856 = vadd.f32 %v767, %v855
    %857 = vmatmul.f32.gmra.mxu0 %v836
    %v858 = vpop.f32.mrf.mxu0
    %v859 = vadd.f32 %v768, %v858
    %860 = vdwg.mxu0
    %862 = vset.pattern.permute.xlu0 0
    %863 = vperm.xlu0 %862, %v856
    %v864 = vpop.permute.xlu0 %863
    %867 = vset.pattern.permute.xlu0 0
    %868 = vperm.xlu0 %867, %v859
    %v869 = vpop.permute.xlu0 %868
    %v872 = vsel %vm102, %v830, 0
    %v875 = vsel %vm102, %v831, 0
    %877 = vmatpush.msra.mxu0 0.0
    %878 = vmatpush.msra.mxu0 0.0
    %879 = vmatpush.msra.mxu0 0.0
    %880 = vmatpush.msra.mxu0 0.0
    %881 = vmatpush.msra.mxu0 0.0
    %882 = vmatpush.msra.mxu0 0.0
    %883 = vmatpush.msra.mxu0 0.0
    %884 = vmatpush.msra.mxu0 0.0
    %885 = vmatpush.msra.mxu0 0.0
    %886 = vmatpush.msra.mxu0 0.0
    %887 = vmatpush.msra.mxu0 0.0
    %888 = vmatpush.msra.mxu0 0.0
    %889 = vmatpush.msra.mxu0 0.0
    %890 = vmatpush.msra.mxu0 0.0
    %891 = vmatpush.msra.mxu0 %v522
    %892 = vmatpush.msra.mxu0 %v519
    %893 = vmatmul.f32.gmra.mxu0 %v872
    %v894 = vpop.f32.mrf.mxu0
    %v895 = vadd.f32 %v864, %v894
    %896 = vmatmul.f32.gmra.mxu0 %v875
    %v897 = vpop.f32.mrf.mxu0
    %v898 = vadd.f32 %v869, %v897
    %899 = vdwg.mxu0
    %900 = vmatpush.msra.mxu0 0.0
    %901 = vmatpush.msra.mxu0 0.0
    %902 = vmatpush.msra.mxu0 0.0
    %903 = vmatpush.msra.mxu0 0.0
    %904 = vmatpush.msra.mxu0 0.0
    %905 = vmatpush.msra.mxu0 0.0
    %906 = vmatpush.msra.mxu0 0.0
    %907 = vmatpush.msra.mxu0 0.0
    %908 = vmatpush.msra.mxu0 0.0
    %909 = vmatpush.msra.mxu0 0.0
    %910 = vmatpush.msra.mxu0 0.0
    %911 = vmatpush.msra.mxu0 0.0
    %912 = vmatpush.msra.mxu0 0.0
    %913 = vmatpush.msra.mxu0 0.0
    %914 = vmatpush.msra.mxu0 %v545
    %915 = vmatpush.msra.mxu0 %v542
    %916 = vmatmul.f32.gmra.mxu0 %v872
    %v917 = vpop.f32.mrf.mxu0
    %v918 = vadd.f32 %v864, %v917
    %919 = vmatmul.f32.gmra.mxu0 %v875
    %v920 = vpop.f32.mrf.mxu0
    %v921 = vadd.f32 %v869, %v920
    %922 = vdwg.mxu0
    %923 = vmatpush.msra.mxu0 0.0
    %924 = vmatpush.msra.mxu0 0.0
    %925 = vmatpush.msra.mxu0 0.0
    %926 = vmatpush.msra.mxu0 0.0
    %927 = vmatpush.msra.mxu0 0.0
    %928 = vmatpush.msra.mxu0 0.0
    %929 = vmatpush.msra.mxu0 0.0
    %930 = vmatpush.msra.mxu0 0.0
    %931 = vmatpush.msra.mxu0 0.0
    %932 = vmatpush.msra.mxu0 0.0
    %933 = vmatpush.msra.mxu0 0.0
    %934 = vmatpush.msra.mxu0 0.0
    %935 = vmatpush.msra.mxu0 0.0
    %936 = vmatpush.msra.mxu0 0.0
    %937 = vmatpush.msra.mxu0 %v568
    %938 = vmatpush.msra.mxu0 %v565
    %939 = vmatmul.f32.gmra.mxu0 %v872
    %v940 = vpop.f32.mrf.mxu0
    %v941 = vadd.f32 %v864, %v940
    %942 = vmatmul.f32.gmra.mxu0 %v875
    %v943 = vpop.f32.mrf.mxu0
    %v944 = vadd.f32 %v869, %v943
    %945 = vdwg.mxu0
    %946 = vmatpush.msra.mxu0 0.0
    %947 = vmatpush.msra.mxu0 0.0
    %948 = vmatpush.msra.mxu0 0.0
    %949 = vmatpush.msra.mxu0 0.0
    %950 = vmatpush.msra.mxu0 0.0
    %951 = vmatpush.msra.mxu0 0.0
    %952 = vmatpush.msra.mxu0 0.0
    %953 = vmatpush.msra.mxu0 0.0
    %954 = vmatpush.msra.mxu0 0.0
    %955 = vmatpush.msra.mxu0 0.0
    %956 = vmatpush.msra.mxu0 0.0
    %957 = vmatpush.msra.mxu0 0.0
    %958 = vmatpush.msra.mxu0 0.0
    %959 = vmatpush.msra.mxu0 0.0
    %960 = vmatpush.msra.mxu0 %v591
    %961 = vmatpush.msra.mxu0 %v588
    %962 = vmatmul.f32.gmra.mxu0 %v872
    %v963 = vpop.f32.mrf.mxu0
    %v964 = vadd.f32 %v864, %v963
    %965 = vmatmul.f32.gmra.mxu0 %v875
    %v966 = vpop.f32.mrf.mxu0
    %v967 = vadd.f32 %v869, %v966
    %968 = vdwg.mxu0
    %969 = vmatpush.msra.mxu0 0.0
    %970 = vmatpush.msra.mxu0 0.0
    %971 = vmatpush.msra.mxu0 0.0
    %972 = vmatpush.msra.mxu0 0.0
    %973 = vmatpush.msra.mxu0 0.0
    %974 = vmatpush.msra.mxu0 0.0
    %975 = vmatpush.msra.mxu0 0.0
    %976 = vmatpush.msra.mxu0 0.0
    %977 = vmatpush.msra.mxu0 0.0
    %978 = vmatpush.msra.mxu0 0.0
    %979 = vmatpush.msra.mxu0 0.0
    %980 = vmatpush.msra.mxu0 0.0
    %981 = vmatpush.msra.mxu0 0.0
    %982 = vmatpush.msra.mxu0 0.0
    %983 = vmatpush.msra.mxu0 %v614
    %984 = vmatpush.msra.mxu0 %v611
    %985 = vmatmul.f32.gmra.mxu0 %v872
    %v986 = vpop.f32.mrf.mxu0
    %v987 = vadd.f32 %v864, %v986
    %988 = vmatmul.f32.gmra.mxu0 %v875
    %v989 = vpop.f32.mrf.mxu0
    %v990 = vadd.f32 %v869, %v989
    %991 = vdwg.mxu0
    %992 = vmatpush.msra.mxu0 0.0
    %993 = vmatpush.msra.mxu0 0.0
    %994 = vmatpush.msra.mxu0 0.0
    %995 = vmatpush.msra.mxu0 0.0
    %996 = vmatpush.msra.mxu0 0.0
    %997 = vmatpush.msra.mxu0 0.0
    %998 = vmatpush.msra.mxu0 0.0
    %999 = vmatpush.msra.mxu0 0.0
    %1000 = vmatpush.msra.mxu0 0.0
    %1001 = vmatpush.msra.mxu0 0.0
    %1002 = vmatpush.msra.mxu0 0.0
    %1003 = vmatpush.msra.mxu0 0.0
    %1004 = vmatpush.msra.mxu0 0.0
    %1005 = vmatpush.msra.mxu0 0.0
    %1006 = vmatpush.msra.mxu0 %v637
    %1007 = vmatpush.msra.mxu0 %v634
    %1008 = vmatmul.f32.gmra.mxu0 %v872
    %v1009 = vpop.f32.mrf.mxu0
    %v1010 = vadd.f32 %v864, %v1009
    %1011 = vmatmul.f32.gmra.mxu0 %v875
    %v1012 = vpop.f32.mrf.mxu0
    %v1013 = vadd.f32 %v869, %v1012
    %1014 = vdwg.mxu0
    %1015 = vmatpush.msra.mxu0 0.0
    %1016 = vmatpush.msra.mxu0 0.0
    %1017 = vmatpush.msra.mxu0 0.0
    %1018 = vmatpush.msra.mxu0 0.0
    %1019 = vmatpush.msra.mxu0 0.0
    %1020 = vmatpush.msra.mxu0 0.0
    %1021 = vmatpush.msra.mxu0 0.0
    %1022 = vmatpush.msra.mxu0 0.0
    %1023 = vmatpush.msra.mxu0 0.0
    %1024 = vmatpush.msra.mxu0 0.0
    %1025 = vmatpush.msra.mxu0 0.0
    %1026 = vmatpush.msra.mxu0 0.0
    %1027 = vmatpush.msra.mxu0 0.0
    %1028 = vmatpush.msra.mxu0 0.0
    %1029 = vmatpush.msra.mxu0 %v660
    %1030 = vmatpush.msra.mxu0 %v657
    %1031 = vmatmul.f32.gmra.mxu0 %v872
    %v1032 = vpop.f32.mrf.mxu0
    %v1033 = vadd.f32 %v864, %v1032
    %1034 = vmatmul.f32.gmra.mxu0 %v875
    %v1035 = vpop.f32.mrf.mxu0
    %v1036 = vadd.f32 %v869, %v1035
    %1037 = vdwg.mxu0
    %1038 = vmatpush.msra.mxu0 0.0
    %1039 = vmatpush.msra.mxu0 0.0
    %1040 = vmatpush.msra.mxu0 0.0
    %1041 = vmatpush.msra.mxu0 0.0
    %1042 = vmatpush.msra.mxu0 0.0
    %1043 = vmatpush.msra.mxu0 0.0
    %1044 = vmatpush.msra.mxu0 0.0
    %1045 = vmatpush.msra.mxu0 0.0
    %1046 = vmatpush.msra.mxu0 0.0
    %1047 = vmatpush.msra.mxu0 0.0
    %1048 = vmatpush.msra.mxu0 0.0
    %1049 = vmatpush.msra.mxu0 0.0
    %1050 = vmatpush.msra.mxu0 0.0
    %1051 = vmatpush.msra.mxu0 0.0
    %1052 = vmatpush.msra.mxu0 %v683
    %1053 = vmatpush.msra.mxu0 %v680
    %1054 = vmatmul.f32.gmra.mxu0 %v872
    %v1055 = vpop.f32.mrf.mxu0
    %v1056 = vadd.f32 %v864, %v1055
    %1057 = vmatmul.f32.gmra.mxu0 %v875
    %v1058 = vpop.f32.mrf.mxu0
    %v1059 = vadd.f32 %v869, %v1058
    %1060 = vdwg.mxu0
    %1061 = vst [vmem:[#allocation5] sm:$0xff] %v895
    %1062 = vst [vmem:[#allocation5 + $0x8] sm:$0xff] %v918
    %1063 = vst [vmem:[#allocation5 + $0x10] sm:$0xff] %v941
    %1064 = vst [vmem:[#allocation5 + $0x18] sm:$0xff] %v964
    %1065 = vst [vmem:[#allocation5 + $0x20] sm:$0xff] %v987
    %1066 = vst [vmem:[#allocation5 + $0x28] sm:$0xff] %v1010
    %1067 = vst [vmem:[#allocation5 + $0x30] sm:$0xff] %v1033
    %1068 = vst [vmem:[#allocation5 + $0x38] sm:$0xff] %v1056
    %1069 = vst [vmem:[#allocation5 + $0x40] sm:$0xff] %v898
    %1070 = vst [vmem:[#allocation5 + $0x48] sm:$0xff] %v921
    %1071 = vst [vmem:[#allocation5 + $0x50] sm:$0xff] %v944
    %1072 = vst [vmem:[#allocation5 + $0x58] sm:$0xff] %v967
    %1073 = vst [vmem:[#allocation5 + $0x60] sm:$0xff] %v990
    %1074 = vst [vmem:[#allocation5 + $0x68] sm:$0xff] %v1013
    %1075 = vst [vmem:[#allocation5 + $0x70] sm:$0xff] %v1036
    %1076 = vst [vmem:[#allocation5 + $0x78] sm:$0xff] %v1059
    // Predicated region
    $region50: #{tpu_custom_call.1} parent=1 // pred_check
      _
    $region51: #{tpu_custom_call.1} parent=1 // pred_check_branch
      %1078 = sbr.rel (0) target = $region53
    $region52: #{tpu_custom_call.1} parent=1 // pred_region
      %1080 = vsyncadd [#allocation4], 0
      %s1081 = sshll.u32 [#allocation5], 4
      %s1082 = int_to_ptr.vmem [resolvable:$true] %s1081
      %s1083 = sshll.u32 %s11, 4
      %s1084 = int_to_ptr.hbm [resolvable:$true] %s1083
      %1089 = dma.vmem_to_hbm [thread:$0]  %s1082, 2048, %s1084, [#allocation4], 1024, 1024, 64
    $region53: #{tpu_custom_call.1} parent=1 // pred_fallthru
      _
    // Predicated region
    $region54: #{tpu_custom_call.1} parent=1 // pred_check
      _
    $region55: #{tpu_custom_call.1} parent=1 // pred_check_branch
      %1091 = sbr.rel (0) target = $region57
    $region56: #{tpu_custom_call.1} parent=1 // pred_region
      %1093 = dma.done [#allocation4], 2048
    $region57: #{tpu_custom_call.1} parent=1 // pred_fallthru
      _
    %1094 = vsyncpa [#allocation3], 1
    %1095 = vsyncpa [#allocation4], 1

</llo_original>
